<compile_context>
chip_gen: v5e
topology: v5e:2x2
jax: 0.10.0
libtpu: 0.0.40
codegen_flags: <defaults>
</compile_context>

<pallas_src>
import jax
import jax.numpy as jnp
from jax.experimental import pallas as pl
from jax.experimental.pallas import tpu as pltpu

LEAK = 0.2
BN_EPS = 1e-5
# Above v5e's 16 MiB scoped-VMEM default, below v7x's 64 MiB physical VMEM.
VMEM_LIMIT_BYTES = 48 * 1024 * 1024


def _leaky(x):
    return jnp.where(x >= 0, x, LEAK * x)


# ---------------------------------------------------------------------------
# Pass 1 (stats): per-channel sum / sum-of-squares of h2 = W2 @ LReLU(W1 @ x + b1).
# Channels-first: x block is (cin, TP), h2 is (c2, TP).  The (c2, TP) h2 tile is
# never written to HBM; per-batch partials accumulate in (c2, 1) VMEM scratch.
# Grid = (N, grid_hw); scratch init at i==0, flush at i==last (per batch).
# ---------------------------------------------------------------------------
def _stats_kernel(x_ref, w1_ref, b1_ref, w2_ref,
                  sum_ref, sumsq_ref,
                  sum_acc, sumsq_acc):
    i = pl.program_id(1)

    @pl.when(i == 0)
    def _():
        sum_acc[...] = jnp.zeros_like(sum_acc)
        sumsq_acc[...] = jnp.zeros_like(sumsq_acc)

    x = x_ref[...].astype(jnp.bfloat16)                                # (cin, TP)
    h1 = _leaky(jnp.dot(w1_ref[...], x,
                        preferred_element_type=jnp.float32) + b1_ref[...])   # (ndf, TP)
    h2 = jnp.dot(w2_ref[...], h1.astype(jnp.bfloat16),
                 preferred_element_type=jnp.float32)                   # (c2, TP) f32

    # Cross-lane reductions go to the XLU, which has slack in this MXU-bound kernel.
    sum_acc[...] += jnp.sum(h2, axis=1, keepdims=True)                 # (c2, 1)
    sumsq_acc[...] += jnp.sum(h2 * h2, axis=1, keepdims=True)

    @pl.when(i == pl.num_programs(1) - 1)
    def _():
        sum_ref[...] = sum_acc[...]
        sumsq_ref[...] = sumsq_acc[...]


# ---------------------------------------------------------------------------
# Pass 2 (output): recompute h1, apply BN-folded conv2 (+shift), LeakyReLU, and
# the final 1x1 conv to one channel.  The final conv runs on the VPU/XLU
# (sum over channels), leaving the MXU free for conv1/conv2; the output block
# is a lane-dense (1, tile_p) row.
# ---------------------------------------------------------------------------
def _output_kernel(x_ref, w1_ref, b1_ref, w2f_ref, shift_ref, w3_ref, o_ref):
    x = x_ref[...].astype(jnp.bfloat16)                                # (cin, TP)
    h1 = _leaky(jnp.dot(w1_ref[...], x,
                        preferred_element_type=jnp.float32) + b1_ref[...])   # (ndf, TP)
    hn = _leaky(jnp.dot(w2f_ref[...], h1.astype(jnp.bfloat16),
                        preferred_element_type=jnp.float32) + shift_ref[...])  # (c2, TP)
    o_ref[...] = jnp.sum(hn * w3_ref[...], axis=0, keepdims=True)      # (1, TP)


def pixel_discriminator_forward(x_nchw, params, *, tile_p=8192):
    """x_nchw: (N, Cin, H, W) float32.  Returns (N, 1, H, W) float32."""
    w1, b1, w2, gamma, beta, w3 = (
        params["w1"], params["b1"], params["w2"],
        params["gamma"], params["beta"], params["w3"],
    )
    n, cin, h, w = x_nchw.shape
    ndf = w1.shape[0]
    c2 = w2.shape[0]
    hw = h * w
    p_valid = n * hw

    # ---- tile selection: pad HW up to a multiple of the tile (never shrink to 128) ----
    tile_p = max(128, (tile_p // 128) * 128)
    hw_pad128 = ((hw + 127) // 128) * 128
    tile_p = min(tile_p, hw_pad128)
    grid_hw = (hw_pad128 + tile_p - 1) // tile_p
    hw_pad = grid_hw * tile_p

    # NCHW -> (N, Cin, HW): pure reshape, no transpose / extra HBM pass.
    x_ncp = x_nchw.reshape(n, cin, hw)
    if hw_pad != hw:
        x_ncp = jnp.pad(x_ncp, ((0, 0), (0, 0), (0, hw_pad - hw)))

    w1_bf = w1.astype(jnp.bfloat16)        # (ndf, cin)
    w2_bf = w2.astype(jnp.bfloat16)        # (c2, ndf)

    # ---- pass 1: BN batch statistics (h2 never materialized in HBM) ----
    sum_parts, sumsq_parts = pl.pallas_call(
        _stats_kernel,
        out_shape=(
            jax.ShapeDtypeStruct((n, c2, 1), jnp.float32),
            jax.ShapeDtypeStruct((n, c2, 1), jnp.float32),
        ),
        grid_spec=pltpu.PrefetchScalarGridSpec(
            num_scalar_prefetch=0,
            grid=(n, grid_hw),
            in_specs=[
                pl.BlockSpec((None, cin, tile_p), lambda b, i: (b, 0, i)),
                pl.BlockSpec((ndf, cin), lambda b, i: (0, 0)),
                pl.BlockSpec((ndf, 1), lambda b, i: (0, 0)),
                pl.BlockSpec((c2, ndf), lambda b, i: (0, 0)),
            ],
            out_specs=[
                pl.BlockSpec((None, c2, 1), lambda b, i: (b, 0, 0)),
                pl.BlockSpec((None, c2, 1), lambda b, i: (b, 0, 0)),
            ],
            scratch_shapes=[
                pltpu.VMEM((c2, 1), jnp.float32),
                pltpu.VMEM((c2, 1), jnp.float32),
            ],
        ),
        compiler_params=pltpu.CompilerParams(
            dimension_semantics=("parallel", "arbitrary"),
            vmem_limit_bytes=VMEM_LIMIT_BYTES),
    )(x_ncp, w1_bf, b1, w2_bf)

    # ---- fold BN into conv2 (tiny, plain JAX, all f32) ----
    sums = jnp.sum(sum_parts[:, :, 0], axis=0)        # (c2,)
    sumsqs = jnp.sum(sumsq_parts[:, :, 0], axis=0)    # (c2,)
    pad_total = n * (hw_pad - hw)
    if pad_total > 0:
        # Padded pixels have x == 0, so their h2 is the constant W2 @ LReLU(b1);
        # subtract their contribution instead of masking inside the kernel.
        h1p = _leaky(b1)                                               # (ndf, 1)
        h2p = jnp.dot(w2_bf, h1p.astype(jnp.bfloat16),
                      preferred_element_type=jnp.float32)[:, 0]        # (c2,)
        sums = sums - pad_total * h2p
        sumsqs = sumsqs - pad_total * h2p * h2p
    mean = sums / p_valid
    var = jnp.maximum(sumsqs / p_valid - mean * mean, 0.0)   # biased var (BN train mode)
    inv_std = jax.lax.rsqrt(var + BN_EPS)
    scale = gamma * inv_std                                  # (c2,)
    shift = (beta - mean * scale)[:, None]                   # (c2, 1)
    w2_folded_bf = (w2 * scale[:, None]).astype(jnp.bfloat16)  # BN scale folded into conv2

    # ---- pass 2: recompute + fused BN/LReLU + final 1x1 conv (lane-dense output) ----
    out3 = pl.pallas_call(
        _output_kernel,
        out_shape=jax.ShapeDtypeStruct((n, 1, hw_pad), jnp.float32),
        grid_spec=pltpu.PrefetchScalarGridSpec(
            num_scalar_prefetch=0,
            grid=(n, grid_hw),
            in_specs=[
                pl.BlockSpec((None, cin, tile_p), lambda b, i: (b, 0, i)),
                pl.BlockSpec((ndf, cin), lambda b, i: (0, 0)),
                pl.BlockSpec((ndf, 1), lambda b, i: (0, 0)),
                pl.BlockSpec((c2, ndf), lambda b, i: (0, 0)),
                pl.BlockSpec((c2, 1), lambda b, i: (0, 0)),
                pl.BlockSpec((c2, 1), lambda b, i: (0, 0)),
            ],
            out_specs=pl.BlockSpec((None, 1, tile_p), lambda b, i: (b, 0, i)),
        ),
        compiler_params=pltpu.CompilerParams(
            dimension_semantics=("parallel", "parallel"),
            vmem_limit_bytes=VMEM_LIMIT_BYTES),
    )(x_ncp, w1_bf, b1, w2_folded_bf, shift, w3)

    # (N, 1, HW_pad) -> drop pad -> (N, 1, H, W)
    return out3[:, :, :hw].reshape(n, 1, h, w)


def _reference_forward(x_nchw, params):
    """Pure-JAX f32 reference mirroring the PyTorch module (training-mode BN)."""
    n, cin, h, w = x_nchw.shape
    x = jnp.transpose(x_nchw, (0, 2, 3, 1)).reshape(-1, cin)          # (P, cin)
    h1 = _leaky(x @ params["w1"].T + params["b1"][:, 0])              # (P, ndf)
    h2 = h1 @ params["w2"].T                                          # (P, c2)
    mean = jnp.mean(h2, axis=0, keepdims=True)
    var = jnp.mean((h2 - mean) ** 2, axis=0, keepdims=True)
    hn = _leaky((h2 - mean) * jax.lax.rsqrt(var + BN_EPS) * params["gamma"]
                + params["beta"])
    out = hn @ params["w3"]                                           # (P, 1)
    return jnp.transpose(out.reshape(n, h, w, 1), (0, 3, 1, 2))


def init_params(key, input_nc, ndf=64):
    """Deterministic synthetic parameters (channels-first conv weights (out, in))."""
    k1, k2, k3, k4 = jax.random.split(key, 4)
    c2 = 2 * ndf
    w1 = 0.1 * jax.random.normal(k1, (ndf, input_nc), jnp.float32)
    b1 = 0.1 * jax.random.normal(k2, (ndf, 1), jnp.float32)
    w2 = 0.1 * jax.random.normal(k3, (c2, ndf), jnp.float32)          # bias=False
    gamma = jnp.ones((c2,), jnp.float32)                              # BN affine init
    beta = jnp.zeros((c2,), jnp.float32)
    w3 = 0.1 * jax.random.normal(k4, (c2, 1), jnp.float32)            # bias=False
    return dict(w1=w1, b1=b1, w2=w2, gamma=gamma, beta=beta, w3=w3)


if __name__ == "__main__":
    key = jax.random.PRNGKey(0)
    kx, kp = jax.random.split(key)

    N, CIN, H, W = 2, 4, 16, 16   # small NCHW input
    NDF = 64

    x = jax.random.normal(kx, (N, CIN, H, W), jnp.float32)
    params = init_params(kp, CIN, NDF)

    out = pixel_discriminator_forward(x, params)
    out = jax.block_until_ready(out)

    ref = jax.block_until_ready(_reference_forward(x, params))
    assert out.shape == (N, 1, H, W), out.shape
    # Kernel uses bf16 MXU operands (f32 accumulation / BN), reference is pure f32:
    # allow a bf16-scale tolerance relative to the output magnitude.
    err = float(jnp.max(jnp.abs(out - ref)))
    tol = 2e-2 + 3e-2 * float(jnp.max(jnp.abs(ref)))
    assert err < tol, (err, tol)

    print("KERNEL_OK")
</pallas_src>

<mosaic_0001>
module attributes {stable_mosaic.version = 11 : i64} {
  func.func @_stats_kernel(%arg0: i32, %arg1: i32, %arg2: memref<1x4x256xf32, #tpu.memory_space<vmem>>, %arg3: memref<64x4xbf16, #tpu.memory_space<vmem>>, %arg4: memref<64x1xf32, #tpu.memory_space<vmem>>, %arg5: memref<128x64xbf16, #tpu.memory_space<vmem>>, %arg6: memref<1x128x1xf32, #tpu.memory_space<vmem>>, %arg7: memref<1x128x1xf32, #tpu.memory_space<vmem>>, %arg8: memref<128x1xf32, #tpu.memory_space<vmem>>, %arg9: memref<128x1xf32, #tpu.memory_space<vmem>>) attributes {dimension_semantics = [#tpu.dimension_semantics<parallel>, #tpu.dimension_semantics<arbitrary>], iteration_bounds = array<i64: 2, 1>, scalar_prefetch = 0 : i64, scratch_operands = 2 : i64, tpu.core_type = #tpu.core_type<tc>, window_params = [{transform_indices = @transform_0, window_bounds = array<i64: 1, 4, 256>}, {pipeline_mode = #tpu.pipeline_mode<synchronous>, transform_indices = @transform_1, window_bounds = array<i64: 64, 4>}, {pipeline_mode = #tpu.pipeline_mode<synchronous>, transform_indices = @transform_2, window_bounds = array<i64: 64, 1>}, {pipeline_mode = #tpu.pipeline_mode<synchronous>, transform_indices = @transform_3, window_bounds = array<i64: 128, 64>}, {transform_indices = @transform_4, window_bounds = array<i64: 1, 128, 1>}, {transform_indices = @transform_5, window_bounds = array<i64: 1, 128, 1>}]} {
    %c0_i32 = arith.constant 0 : i32
    %0 = arith.cmpi eq, %arg1, %c0_i32 : i32
    %1 = arith.extui %0 : i1 to i32
    %c0_i32_0 = arith.constant 0 : i32
    %2 = arith.cmpi ne, %1, %c0_i32_0 : i32
    scf.if %2 {
      %cst_24 = arith.constant 0.000000e+00 : f32
      %33 = vector.broadcast %cst_24 : f32 to vector<128x1xf32>
      %c0_25 = arith.constant 0 : index
      %c0_26 = arith.constant 0 : index
      %34 = vector.load %arg8[%c0_25, %c0_26] : memref<128x1xf32, #tpu.memory_space<vmem>>, vector<128x1xf32>
      tpu.vector_store %arg8[%c0_25, %c0_26], %33 {strides = array<i32>} : memref<128x1xf32, #tpu.memory_space<vmem>>, vector<128x1xf32>,
      %cst_27 = arith.constant 0.000000e+00 : f32
      %35 = vector.broadcast %cst_27 : f32 to vector<128x1xf32>
      %c0_28 = arith.constant 0 : index
      %c0_29 = arith.constant 0 : index
      %36 = vector.load %arg9[%c0_28, %c0_29] : memref<128x1xf32, #tpu.memory_space<vmem>>, vector<128x1xf32>
      tpu.vector_store %arg9[%c0_28, %c0_29], %35 {strides = array<i32>} : memref<128x1xf32, #tpu.memory_space<vmem>>, vector<128x1xf32>,
    } else {
    }
    %c0 = arith.constant 0 : index
    %c0_1 = arith.constant 0 : index
    %c0_2 = arith.constant 0 : index
    %3 = vector.load %arg2[%c0, %c0_1, %c0_2] : memref<1x4x256xf32, #tpu.memory_space<vmem>>, vector<1x4x256xf32>
    %4 = vector.shape_cast %3 : vector<1x4x256xf32> to vector<4x256xf32>
    %5 = arith.truncf %4 : vector<4x256xf32> to vector<4x256xbf16>
    %c0_3 = arith.constant 0 : index
    %c0_4 = arith.constant 0 : index
    %6 = vector.load %arg3[%c0_3, %c0_4] : memref<64x4xbf16, #tpu.memory_space<vmem>>, vector<64x4xbf16>
    %cst = arith.constant dense<0.000000e+00> : vector<64x256xf32>
    %7 = tpu.matmul %6, %5, %cst {dimension_numbers = #tpu.dot_dimension_numbers<[1], [0], [0], [1], [0, 0, 1, 1], [], []>} : vector<64x4xbf16>, vector<4x256xbf16>, vector<64x256xf32> -> vector<64x256xf32>
    %c0_5 = arith.constant 0 : index
    %c0_6 = arith.constant 0 : index
    %8 = vector.load %arg4[%c0_5, %c0_6] : memref<64x1xf32, #tpu.memory_space<vmem>>, vector<64x1xf32>
    %9 = vector.broadcast %8 : vector<64x1xf32> to vector<64x256xf32>
    %10 = arith.addf %7, %9 : vector<64x256xf32>
    %cst_7 = arith.constant 0.000000e+00 : f32
    %11 = vector.broadcast %cst_7 : f32 to vector<64x256xf32>
    %12 = arith.cmpf oge, %10, %11 : vector<64x256xf32>
    %cst_8 = arith.constant 2.000000e-01 : f32
    %13 = vector.broadcast %cst_8 : f32 to vector<64x256xf32>
    %14 = arith.mulf %13, %10 : vector<64x256xf32>
    %15 = arith.select %12, %10, %14 : vector<64x256xi1>, vector<64x256xf32>
    %c0_9 = arith.constant 0 : index
    %c0_10 = arith.constant 0 : index
    %16 = vector.load %arg5[%c0_9, %c0_10] : memref<128x64xbf16, #tpu.memory_space<vmem>>, vector<128x64xbf16>
    %17 = arith.truncf %15 : vector<64x256xf32> to vector<64x256xbf16>
    %cst_11 = arith.constant dense<0.000000e+00> : vector<128x256xf32>
    %18 = tpu.matmul %16, %17, %cst_11 {dimension_numbers = #tpu.dot_dimension_numbers<[1], [0], [0], [1], [0, 0, 1, 1], [], []>} : vector<128x64xbf16>, vector<64x256xbf16>, vector<128x256xf32> -> vector<128x256xf32>
    %c0_12 = arith.constant 0 : index
    %c0_13 = arith.constant 0 : index
    %19 = vector.load %arg8[%c0_12, %c0_13] : memref<128x1xf32, #tpu.memory_space<vmem>>, vector<128x1xf32>
    %cst_14 = arith.constant dense<0.000000e+00> : vector<128xf32>
    %20 = vector.multi_reduction <add>, %18, %cst_14 [1] : vector<128x256xf32> to vector<128xf32>
    %21 = vector.shape_cast %20 : vector<128xf32> to vector<128x1xf32>
    %22 = arith.addf %19, %21 : vector<128x1xf32>
    %c0_15 = arith.constant 0 : index
    %c0_16 = arith.constant 0 : index
    %23 = vector.load %arg8[%c0_15, %c0_16] : memref<128x1xf32, #tpu.memory_space<vmem>>, vector<128x1xf32>
    tpu.vector_store %arg8[%c0_15, %c0_16], %22 {strides = array<i32>} : memref<128x1xf32, #tpu.memory_space<vmem>>, vector<128x1xf32>,
    %c0_17 = arith.constant 0 : index
    %c0_18 = arith.constant 0 : index
    %24 = vector.load %arg9[%c0_17, %c0_18] : memref<128x1xf32, #tpu.memory_space<vmem>>, vector<128x1xf32>
    %25 = arith.mulf %18, %18 : vector<128x256xf32>
    %cst_19 = arith.constant dense<0.000000e+00> : vector<128xf32>
    %26 = vector.multi_reduction <add>, %25, %cst_19 [1] : vector<128x256xf32> to vector<128xf32>
    %27 = vector.shape_cast %26 : vector<128xf32> to vector<128x1xf32>
    %28 = arith.addf %24, %27 : vector<128x1xf32>
    %c0_20 = arith.constant 0 : index
    %c0_21 = arith.constant 0 : index
    %29 = vector.load %arg9[%c0_20, %c0_21] : memref<128x1xf32, #tpu.memory_space<vmem>>, vector<128x1xf32>
    tpu.vector_store %arg9[%c0_20, %c0_21], %28 {strides = array<i32>} : memref<128x1xf32, #tpu.memory_space<vmem>>, vector<128x1xf32>,
    %c0_i32_22 = arith.constant 0 : i32
    %30 = arith.cmpi eq, %arg1, %c0_i32_22 : i32
    %31 = arith.extui %30 : i1 to i32
    %c0_i32_23 = arith.constant 0 : i32
    %32 = arith.cmpi ne, %31, %c0_i32_23 : i32
    scf.if %32 {
      %c0_24 = arith.constant 0 : index
      %c0_25 = arith.constant 0 : index
      %33 = vector.load %arg8[%c0_24, %c0_25] : memref<128x1xf32, #tpu.memory_space<vmem>>, vector<128x1xf32>
      %c0_26 = arith.constant 0 : index
      %c0_27 = arith.constant 0 : index
      %c0_28 = arith.constant 0 : index
      %34 = vector.load %arg6[%c0_26, %c0_27, %c0_28] : memref<1x128x1xf32, #tpu.memory_space<vmem>>, vector<1x128x1xf32>
      %35 = vector.shape_cast %34 : vector<1x128x1xf32> to vector<128x1xf32>
      %36 = vector.shape_cast %33 : vector<128x1xf32> to vector<1x128x1xf32>
      tpu.vector_store %arg6[%c0_26, %c0_27, %c0_28], %36 {strides = array<i32>} : memref<1x128x1xf32, #tpu.memory_space<vmem>>, vector<1x128x1xf32>,
      %c0_29 = arith.constant 0 : index
      %c0_30 = arith.constant 0 : index
      %37 = vector.load %arg9[%c0_29, %c0_30] : memref<128x1xf32, #tpu.memory_space<vmem>>, vector<128x1xf32>
      %c0_31 = arith.constant 0 : index
      %c0_32 = arith.constant 0 : index
      %c0_33 = arith.constant 0 : index
      %38 = vector.load %arg7[%c0_31, %c0_32, %c0_33] : memref<1x128x1xf32, #tpu.memory_space<vmem>>, vector<1x128x1xf32>
      %39 = vector.shape_cast %38 : vector<1x128x1xf32> to vector<128x1xf32>
      %40 = vector.shape_cast %37 : vector<128x1xf32> to vector<1x128x1xf32>
      tpu.vector_store %arg7[%c0_31, %c0_32, %c0_33], %40 {strides = array<i32>} : memref<1x128x1xf32, #tpu.memory_space<vmem>>, vector<1x128x1xf32>,
    } else {
    }
    return
  }
  func.func @transform_0(%arg0: i32, %arg1: i32) -> (i32, i32, i32) {
    %c0_i32 = arith.constant 0 : i32
    %c0_i32_0 = arith.constant 0 : i32
    return %arg0, %c0_i32, %arg1 : i32, i32, i32
  }
  func.func @transform_1(%arg0: i32, %arg1: i32) -> (i32, i32) {
    %c0_i32 = arith.constant 0 : i32
    %c0_i32_0 = arith.constant 0 : i32
    %c0_i32_1 = arith.constant 0 : i32
    return %c0_i32, %c0_i32_0 : i32, i32
  }
  func.func @transform_2(%arg0: i32, %arg1: i32) -> (i32, i32) {
    %c0_i32 = arith.constant 0 : i32
    %c0_i32_0 = arith.constant 0 : i32
    %c0_i32_1 = arith.constant 0 : i32
    return %c0_i32, %c0_i32_0 : i32, i32
  }
  func.func @transform_3(%arg0: i32, %arg1: i32) -> (i32, i32) {
    %c0_i32 = arith.constant 0 : i32
    %c0_i32_0 = arith.constant 0 : i32
    %c0_i32_1 = arith.constant 0 : i32
    return %c0_i32, %c0_i32_0 : i32, i32
  }
  func.func @transform_4(%arg0: i32, %arg1: i32) -> (i32, i32, i32) {
    %c0_i32 = arith.constant 0 : i32
    %c0_i32_0 = arith.constant 0 : i32
    %c0_i32_1 = arith.constant 0 : i32
    return %arg0, %c0_i32, %c0_i32_0 : i32, i32, i32
  }
  func.func @transform_5(%arg0: i32, %arg1: i32) -> (i32, i32, i32) {
    %c0_i32 = arith.constant 0 : i32
    %c0_i32_0 = arith.constant 0 : i32
    %c0_i32_1 = arith.constant 0 : i32
    return %arg0, %c0_i32, %c0_i32_0 : i32, i32, i32
  }
}

</mosaic_0001>

<llo_original>
// kernel: tpu_custom_call.1
$region0: #{tpu_custom_call.1}
  #allocation0 [shape = 'u32[]', space=smem, size = 0x4, offset = 0x4, fixed_abs, tag = 'smem constant byte address 0x4 - core index']
  #allocation1 [shape = 'u32[72,128]{1,0:T(1,128)}', space=vmem, size = 0x9000, scoped, tag = 'internal scratch']
  #allocation2 [shape = 'f32[128,1]{1,0:T(8,128)}', space=vmem, size = 0x10000, scoped, tag = 'scratch operand']
  #allocation3 [shape = 'f32[128,1]{1,0:T(8,128)}', space=vmem, size = 0x10000, scoped, tag = 'scratch operand']
  %s0 = inlined_call_operand.vmem [shape: f32[2,4,256], index: 0, kind: input, shape index: {}]
  %s1 = inlined_call_operand.vmem [shape: bf16[64,4], index: 1, kind: input, shape index: {}]
  %s2 = inlined_call_operand.vmem [shape: f32[64,1], index: 2, kind: input, shape index: {}]
  %s3 = inlined_call_operand.vmem [shape: bf16[128,64], index: 3, kind: input, shape index: {}]
  %s4 = inlined_call_operand.vmem [shape: f32[2,128,1], index: 4, kind: output, shape index: {0}]
  %s5 = inlined_call_operand.vmem [shape: f32[2,128,1], index: 5, kind: output, shape index: {1}]
  %6 = xla_tuple %s4, %s5
  %s7 = sld [smem:[#allocation0]]
  $region65: #{tpu_custom_call.1} parent=0
    _
  %s9 = ssub.s32 1, %s7
  %s10 = scalar_select 0, %s9, %s7
  loop: start=0, step=1, limit=4
  $region2: #{tpu_custom_call.1} parent=0 // loop_pre_header
    _
  $region3: #{tpu_custom_call.1} parent=0 // loop_header
    %s12 = sphi 0, %s16
    %p13 = scmp.ge.s32.totalorder %s12, 4
    %s19 = sphi 0, %s31
    %s20 = sphi 0, %s27
    %s21 = sphi 0, %s19
    %s22 = sphi 0, %s20
    %s23 = sphi 0, %s21
    %s24 = sphi 0, %s22
    %s36 = sphi 0, %s38
    %s39 = sphi 0, %s36
    %s40 = sphi 0, %s39
    %s56 = sphi 0, %s40
    %s60 = sphi 0, %s60
    %s62 = sphi 0, %s60
    %s63 = sphi 0, %s62
    %s77 = sphi 0, %s63
    %s81 = sphi 0, %s81
    %s83 = sphi 0, %s81
    %s84 = sphi 0, %s83
    %s98 = sphi 0, %s84
    %s102 = sphi 0, %s102
    %s104 = sphi 0, %s102
    %s105 = sphi 0, %s104
    %s119 = sphi 0, %s105
    %s125 = sphi 0, %s127
    %s128 = sphi 0, %s125
    %s129 = sphi 0, %s128
    %s145 = sphi 0, %s129
    %s151 = sphi 0, %s153
    %s154 = sphi 0, %s151
    %s155 = sphi 0, %s154
    %s171 = sphi 0, %s155
  $region4: #{tpu_custom_call.1} parent=0 // loop_header_branch
    %15 = sbr.rel (%p13) target = $region8
  $region5: #{tpu_custom_call.1} parent=0 // loop_body
    %s17 = ssub.s32 %s12, 1
    %s18 = ssub.s32 %s12, 2
    %s25 = sadd.s32 1, %s20
    %p26 = scmp.ge.s32.totalorder %s25, 1
    %s27 = scalar_select %p26, 0, %s25
    %s28 = sadd.s32 1, %s19
    %s29 = scalar_select %p26, %s28, %s19
    %p30 = scmp.ge.s32.totalorder %s29, 2
    %s31 = scalar_select %p30, 0, %s29
    %s32 = ssub.s32 %s19, %s31
    %s33 = ssub.s32 %s20, %s27
    %s34 = sor.u32 %s32, %s33
    %p35 = scmp.eq.s32.totalorder %s34, 0
    %s37 = sadd.s32 %s36, 1
    %s38 = scalar_select %p35, %s36, %s37
    %p41 = pneg %p35
    %p42 = scmp.eq.s32.totalorder %s12, 1
    %p43 = por %p41, %p42
    %p44 = scmp.ne.s32.totalorder %s36, %s39
    %p45 = scmp.eq.s32.totalorder %s12, 0
    %p46 = por %p44, %p45
    %p47 = scmp.ne.s32.totalorder %s36, %s39
    %p48 = scmp.eq.s32.totalorder %s17, 1
    %p49 = por %p47, %p48
    %p50 = scmp.ne.s32.totalorder %s39, %s40
    %p51 = scmp.eq.s32.totalorder %s17, 0
    %p52 = por %p50, %p51
    %p53 = scmp.ne.s32.totalorder %s39, %s40
    %p54 = scmp.eq.s32.totalorder %s18, 1
    %p55 = por %p53, %p54
    %p57 = scmp.ne.s32.totalorder %s40, %s56
    %p58 = scmp.eq.s32.totalorder %s18, 0
    %p59 = por %p57, %p58
    %s61 = sadd.s32 %s60, 1
    %p64 = scmp.eq.s32.totalorder %s12, 1
    %p65 = scmp.ne.s32.totalorder %s60, %s62
    %p66 = scmp.eq.s32.totalorder %s12, 0
    %p67 = por %p65, %p66
    %p68 = scmp.ne.s32.totalorder %s60, %s62
    %p69 = scmp.eq.s32.totalorder %s17, 1
    %p70 = por %p68, %p69
    %p71 = scmp.ne.s32.totalorder %s62, %s63
    %p72 = scmp.eq.s32.totalorder %s17, 0
    %p73 = por %p71, %p72
    %p74 = scmp.ne.s32.totalorder %s62, %s63
    %p75 = scmp.eq.s32.totalorder %s18, 1
    %p76 = por %p74, %p75
    %p78 = scmp.ne.s32.totalorder %s63, %s77
    %p79 = scmp.eq.s32.totalorder %s18, 0
    %p80 = por %p78, %p79
    %s82 = sadd.s32 %s81, 1
    %p85 = scmp.eq.s32.totalorder %s12, 1
    %p86 = scmp.ne.s32.totalorder %s81, %s83
    %p87 = scmp.eq.s32.totalorder %s12, 0
    %p88 = por %p86, %p87
    %p89 = scmp.ne.s32.totalorder %s81, %s83
    %p90 = scmp.eq.s32.totalorder %s17, 1
    %p91 = por %p89, %p90
    %p92 = scmp.ne.s32.totalorder %s83, %s84
    %p93 = scmp.eq.s32.totalorder %s17, 0
    %p94 = por %p92, %p93
    %p95 = scmp.ne.s32.totalorder %s83, %s84
    %p96 = scmp.eq.s32.totalorder %s18, 1
    %p97 = por %p95, %p96
    %p99 = scmp.ne.s32.totalorder %s84, %s98
    %p100 = scmp.eq.s32.totalorder %s18, 0
    %p101 = por %p99, %p100
    %s103 = sadd.s32 %s102, 1
    %p106 = scmp.eq.s32.totalorder %s12, 1
    %p107 = scmp.ne.s32.totalorder %s102, %s104
    %p108 = scmp.eq.s32.totalorder %s12, 0
    %p109 = por %p107, %p108
    %p110 = scmp.ne.s32.totalorder %s102, %s104
    %p111 = scmp.eq.s32.totalorder %s17, 1
    %p112 = por %p110, %p111
    %p113 = scmp.ne.s32.totalorder %s104, %s105
    %p114 = scmp.eq.s32.totalorder %s17, 0
    %p115 = por %p113, %p114
    %p116 = scmp.ne.s32.totalorder %s104, %s105
    %p117 = scmp.eq.s32.totalorder %s18, 1
    %p118 = por %p116, %p117
    %p120 = scmp.ne.s32.totalorder %s105, %s119
    %p121 = scmp.eq.s32.totalorder %s18, 0
    %p122 = por %p120, %p121
    %s123 = ssub.s32 %s19, %s31
    %p124 = scmp.eq.s32.totalorder %s123, 0
    %s126 = sadd.s32 %s125, 1
    %s127 = scalar_select %p124, %s125, %s126
    %p130 = pneg %p124
    %p131 = scmp.eq.s32.totalorder %s12, 1
    %p132 = por %p130, %p131
    %p133 = scmp.ne.s32.totalorder %s125, %s128
    %p134 = scmp.eq.s32.totalorder %s12, 0
    %p135 = por %p133, %p134
    %p136 = scmp.ne.s32.totalorder %s125, %s128
    %p137 = scmp.eq.s32.totalorder %s17, 1
    %p138 = por %p136, %p137
    %p139 = scmp.ne.s32.totalorder %s128, %s129
    %p140 = scmp.eq.s32.totalorder %s17, 0
    %p141 = por %p139, %p140
    %p142 = scmp.ne.s32.totalorder %s128, %s129
    %p143 = scmp.eq.s32.totalorder %s18, 1
    %p144 = por %p142, %p143
    %p146 = scmp.ne.s32.totalorder %s129, %s145
    %p147 = scmp.eq.s32.totalorder %s18, 0
    %p148 = por %p146, %p147
    %s149 = ssub.s32 %s19, %s31
    %p150 = scmp.eq.s32.totalorder %s149, 0
    %s152 = sadd.s32 %s151, 1
    %s153 = scalar_select %p150, %s151, %s152
    %p156 = pneg %p150
    %p157 = scmp.eq.s32.totalorder %s12, 1
    %p158 = por %p156, %p157
    %p159 = scmp.ne.s32.totalorder %s151, %s154
    %p160 = scmp.eq.s32.totalorder %s12, 0
    %p161 = por %p159, %p160
    %p162 = scmp.ne.s32.totalorder %s151, %s154
    %p163 = scmp.eq.s32.totalorder %s17, 1
    %p164 = por %p162, %p163
    %p165 = scmp.ne.s32.totalorder %s154, %s155
    %p166 = scmp.eq.s32.totalorder %s17, 0
    %p167 = por %p165, %p166
    %p168 = scmp.ne.s32.totalorder %s154, %s155
    %p169 = scmp.eq.s32.totalorder %s18, 1
    %p170 = por %p168, %p169
    %p172 = scmp.ne.s32.totalorder %s155, %s171
    %p173 = scmp.eq.s32.totalorder %s18, 0
    %p174 = por %p172, %p173
    %p175 = scmp.le.s32.totalorder 1, %s12
    %p176 = scmp.lt.s32.totalorder %s12, 3
    %p177 = pnand %p175, %p176
    %p178 = pneg %p177
    // Predicated region
    $region9: #{tpu_custom_call.1} parent=5 // pred_check
      _
    $region10: #{tpu_custom_call.1} parent=5 // pred_check_branch
      %180 = sbr.rel (%p177) target = $region12
    $region11: #{tpu_custom_call.1} parent=5 // pred_region
      %s181 = ssub.s32 %s12, 1
      // Predicated region
      $region13: #{tpu_custom_call.1} parent=11 // pred_check
        %p182 = pneg %p73
      $region14: #{tpu_custom_call.1} parent=11 // pred_check_branch
        %184 = sbr.rel (%p182) target = $region16
      $region15: #{tpu_custom_call.1} parent=11 // pred_region
        _
      $region16: #{tpu_custom_call.1} parent=11 // pred_fallthru
        _
      // Predicated region
      $region17: #{tpu_custom_call.1} parent=11 // pred_check
        %p185 = pneg %p94
      $region18: #{tpu_custom_call.1} parent=11 // pred_check_branch
        %187 = sbr.rel (%p185) target = $region20
      $region19: #{tpu_custom_call.1} parent=11 // pred_region
        _
      $region20: #{tpu_custom_call.1} parent=11 // pred_fallthru
        _
      // Predicated region
      $region21: #{tpu_custom_call.1} parent=11 // pred_check
        %p188 = pneg %p115
      $region22: #{tpu_custom_call.1} parent=11 // pred_check_branch
        %190 = sbr.rel (%p188) target = $region24
      $region23: #{tpu_custom_call.1} parent=11 // pred_region
        _
      $region24: #{tpu_custom_call.1} parent=11 // pred_fallthru
        _
    $region12: #{tpu_custom_call.1} parent=5 // pred_fallthru
      _
    %p191 = scmp.lt.s32.totalorder %s12, 2
    // Predicated region
    $region25: #{tpu_custom_call.1} parent=5 // pred_check
      %p192 = pneg %p191
    $region26: #{tpu_custom_call.1} parent=5 // pred_check_branch
      %194 = sbr.rel (%p192) target = $region28
    $region27: #{tpu_custom_call.1} parent=5 // pred_region
      // Predicated region
      $region29: #{tpu_custom_call.1} parent=27 // pred_check
        %p195 = pneg %p46
      $region30: #{tpu_custom_call.1} parent=27 // pred_check_branch
        %197 = sbr.rel (%p195) target = $region32
      $region31: #{tpu_custom_call.1} parent=27 // pred_region
        %s198 = smul.u32 2, %s20
        %p199 = scmp.lt.s32.totalorder %s19, 1
        %s200 = scalar_select %p199, %s19, 1
        %p201 = scmp.lt.s32.totalorder %s198, 1
        %s202 = scalar_select %p201, %s198, 1
        %s203 = smul.addr %s200, 2
        %s204 = sadd.s32 %s202, %s203
        %s205 = smul.addr %s204, 4
        %s206 = scalar_lea.vmem %s0, %s205
        %s207 = smul.u32 2, %s20
      $region32: #{tpu_custom_call.1} parent=27 // pred_fallthru
        _
    $region28: #{tpu_custom_call.1} parent=5 // pred_fallthru
      _
    %p208 = scmp.le.s32.totalorder 1, %s12
    %p209 = scmp.lt.s32.totalorder %s12, 3
    %p210 = pnand %p208, %p209
    %p211 = pneg %p210
    // Predicated region
    $region33: #{tpu_custom_call.1} parent=5 // pred_check
      _
    $region34: #{tpu_custom_call.1} parent=5 // pred_check_branch
      %213 = sbr.rel (%p210) target = $region36
    $region35: #{tpu_custom_call.1} parent=5 // pred_region
      %s214 = ssub.s32 %s12, 1
      %s215 = smul.u32 2, %s22
      %p216 = scmp.lt.s32.totalorder %s21, 1
      %s217 = scalar_select %p216, %s21, 1
      %p218 = scmp.lt.s32.totalorder %s215, 1
      %s219 = scalar_select %p218, %s215, 1
      %s220 = smul.addr %s217, 2
      %s221 = sadd.s32 %s219, %s220
      %s222 = smul.addr %s221, 4
      %s223 = scalar_lea.vmem %s0, %s222
      %p224 = pneg %p52
      %p225 = pneg %p49
      %p226 = pneg %p73
      %p227 = pneg %p70
      %p228 = pneg %p94
      %p229 = pneg %p91
      %p230 = pneg %p115
      %p231 = pneg %p112
      %p232 = pneg %p141
      %p233 = pneg %p138
      %p234 = scmp.lt.s32.totalorder %s21, 1
      %s235 = scalar_select %p234, %s21, 1
      %s236 = smul.addr %s235, 16
      %s237 = smul.addr %s236, 8
      %s238 = scalar_lea.vmem %s4, %s237
      %p239 = pneg %p167
      %p240 = pneg %p164
      %p241 = scmp.lt.s32.totalorder %s21, 1
      %s242 = scalar_select %p241, %s21, 1
      %s243 = smul.addr %s242, 16
      %s244 = smul.addr %s243, 8
      %s245 = scalar_lea.vmem %s5, %s244
      %s246 = smul.u32 2, %s22
      %p247 = scmp.lt.s32.totalorder %s21, 1
      %s248 = scalar_select %p247, %s21, 1
      %p249 = scmp.lt.s32.totalorder %s246, 1
      %s250 = scalar_select %p249, %s246, 1
      %s251 = smul.addr %s248, 2
      %s252 = sadd.s32 %s250, %s251
      %s253 = smul.addr %s252, 4
      %s254 = scalar_lea.vmem %s0, %s253
      %s255 = smul.u32 2, %s22
      %p256 = scmp.lt.s32.totalorder %s21, 1
      %s257 = scalar_select %p256, %s21, 1
      %s258 = smul.addr %s257, 16
      %s259 = smul.addr %s258, 8
      %s260 = scalar_lea.vmem %s4, %s259
      %p261 = scmp.lt.s32.totalorder %s21, 1
      %s262 = scalar_select %p261, %s21, 1
      %s263 = smul.addr %s262, 16
      %s264 = smul.addr %s263, 8
      %s265 = scalar_lea.vmem %s5, %s264
      %p267 = scmp.eq.s32.totalorder %s22, 0
      // Predicated region
      $region37: #{tpu_custom_call.1} parent=35 // pred_check
        %p268 = pneg %p267
      $region38: #{tpu_custom_call.1} parent=35 // pred_check_branch
        %270 = sbr.rel (%p268) target = $region40
      $region39: #{tpu_custom_call.1} parent=35 // pred_region
        %vm271 = vcmask 7168
        %272 = vst.msk [vmem:[#allocation2] sm:$0xff] %vm271, 0.0
        %273 = vst.msk [vmem:[#allocation2 + $0x8] sm:$0xff] %vm271, 0.0
        %274 = vst.msk [vmem:[#allocation2 + $0x10] sm:$0xff] %vm271, 0.0
        %275 = vst.msk [vmem:[#allocation2 + $0x18] sm:$0xff] %vm271, 0.0
        %276 = vst.msk [vmem:[#allocation2 + $0x20] sm:$0xff] %vm271, 0.0
        %277 = vst.msk [vmem:[#allocation2 + $0x28] sm:$0xff] %vm271, 0.0
        %278 = vst.msk [vmem:[#allocation2 + $0x30] sm:$0xff] %vm271, 0.0
        %279 = vst.msk [vmem:[#allocation2 + $0x38] sm:$0xff] %vm271, 0.0
        %280 = vst.msk [vmem:[#allocation2 + $0x40] sm:$0xff] %vm271, 0.0
        %281 = vst.msk [vmem:[#allocation2 + $0x48] sm:$0xff] %vm271, 0.0
        %282 = vst.msk [vmem:[#allocation2 + $0x50] sm:$0xff] %vm271, 0.0
        %283 = vst.msk [vmem:[#allocation2 + $0x58] sm:$0xff] %vm271, 0.0
        %284 = vst.msk [vmem:[#allocation2 + $0x60] sm:$0xff] %vm271, 0.0
        %285 = vst.msk [vmem:[#allocation2 + $0x68] sm:$0xff] %vm271, 0.0
        %286 = vst.msk [vmem:[#allocation2 + $0x70] sm:$0xff] %vm271, 0.0
        %287 = vst.msk [vmem:[#allocation2 + $0x78] sm:$0xff] %vm271, 0.0
        %288 = vst.msk [vmem:[#allocation3] sm:$0xff] %vm271, 0.0
        %289 = vst.msk [vmem:[#allocation3 + $0x8] sm:$0xff] %vm271, 0.0
        %290 = vst.msk [vmem:[#allocation3 + $0x10] sm:$0xff] %vm271, 0.0
        %291 = vst.msk [vmem:[#allocation3 + $0x18] sm:$0xff] %vm271, 0.0
        %292 = vst.msk [vmem:[#allocation3 + $0x20] sm:$0xff] %vm271, 0.0
        %293 = vst.msk [vmem:[#allocation3 + $0x28] sm:$0xff] %vm271, 0.0
        %294 = vst.msk [vmem:[#allocation3 + $0x30] sm:$0xff] %vm271, 0.0
        %295 = vst.msk [vmem:[#allocation3 + $0x38] sm:$0xff] %vm271, 0.0
        %296 = vst.msk [vmem:[#allocation3 + $0x40] sm:$0xff] %vm271, 0.0
        %297 = vst.msk [vmem:[#allocation3 + $0x48] sm:$0xff] %vm271, 0.0
        %298 = vst.msk [vmem:[#allocation3 + $0x50] sm:$0xff] %vm271, 0.0
        %299 = vst.msk [vmem:[#allocation3 + $0x58] sm:$0xff] %vm271, 0.0
        %300 = vst.msk [vmem:[#allocation3 + $0x60] sm:$0xff] %vm271, 0.0
        %301 = vst.msk [vmem:[#allocation3 + $0x68] sm:$0xff] %vm271, 0.0
        %302 = vst.msk [vmem:[#allocation3 + $0x70] sm:$0xff] %vm271, 0.0
        %303 = vst.msk [vmem:[#allocation3 + $0x78] sm:$0xff] %vm271, 0.0
      $region40: #{tpu_custom_call.1} parent=35 // pred_fallthru
        _
      %v304 = vld [vmem:[%s254] sm:$0xff]
      %306 = vst [vmem:[#allocation1] ss:$2 sm:$0xff] %v304
      %v307 = vld.sshfl [vmem:[#allocation1] sm:$0xff pattern:$0x75316420]
      %v308 = vld.sshfl [vmem:[#allocation1 + $0x8] sm:$0xff pattern:$0x75316420]
      %v311 = vpack.c.bf16 %v307, %v307
      %v312 = vpack.c.bf16 %v308, %v308
      %v313 = vld [vmem:[%s1] sm:$0xf]
      %v314 = vld [vmem:[%s1 + $0x4] sm:$0xf]
      %v315 = vld [vmem:[%s1 + $0x8] sm:$0xf]
      %v316 = vld [vmem:[%s1 + $0xc] sm:$0xf]
      %v317 = vld [vmem:[%s1 + $0x10] sm:$0xf]
      %v318 = vld [vmem:[%s1 + $0x14] sm:$0xf]
      %v319 = vld [vmem:[%s1 + $0x18] sm:$0xf]
      %v320 = vld [vmem:[%s1 + $0x1c] sm:$0xf]
      %v321 = vld [vmem:[%s2] sm:$0xff]
      %v322 = vld [vmem:[%s2 + $0x8] sm:$0xff]
      %v323 = vld [vmem:[%s2 + $0x10] sm:$0xff]
      %v324 = vld [vmem:[%s2 + $0x18] sm:$0xff]
      %v325 = vld [vmem:[%s2 + $0x20] sm:$0xff]
      %v326 = vld [vmem:[%s2 + $0x28] sm:$0xff]
      %v327 = vld [vmem:[%s2 + $0x30] sm:$0xff]
      %v328 = vld [vmem:[%s2 + $0x38] sm:$0xff]
      %330 = vset.pattern.permute.xlu0 0
      %331 = vperm.xlu0 %330, %v321
      %v332 = vpop.permute.xlu0 %331
      %335 = vset.pattern.permute.xlu0 0
      %336 = vperm.xlu0 %335, %v322
      %v337 = vpop.permute.xlu0 %336
      %340 = vset.pattern.permute.xlu0 0
      %341 = vperm.xlu0 %340, %v323
      %v342 = vpop.permute.xlu0 %341
      %345 = vset.pattern.permute.xlu0 0
      %346 = vperm.xlu0 %345, %v324
      %v347 = vpop.permute.xlu0 %346
      %350 = vset.pattern.permute.xlu0 0
      %351 = vperm.xlu0 %350, %v325
      %v352 = vpop.permute.xlu0 %351
      %355 = vset.pattern.permute.xlu0 0
      %356 = vperm.xlu0 %355, %v326
      %v357 = vpop.permute.xlu0 %356
      %360 = vset.pattern.permute.xlu0 0
      %361 = vperm.xlu0 %360, %v327
      %v362 = vpop.permute.xlu0 %361
      %365 = vset.pattern.permute.xlu0 0
      %366 = vperm.xlu0 %365, %v328
      %v367 = vpop.permute.xlu0 %366
      %v377 = vunpack.c.l.b16 %v313
      %v378 = vunpack.c.l.b16 %v314
      %v379 = vunpack.c.l.b16 %v315
      %v380 = vunpack.c.l.b16 %v316
      %v381 = vunpack.c.l.b16 %v317
      %v382 = vunpack.c.l.b16 %v318
      %v383 = vunpack.c.l.b16 %v319
      %v384 = vunpack.c.l.b16 %v320
      %v385 = vpack.c.b16 %v378, %v377
      %v386 = vpack.c.b16 %v380, %v379
      %v387 = vpack.c.b16 %v382, %v381
      %v388 = vpack.c.b16 %v384, %v383
      %vm389 = vcmask 31744
      %v391 = vsel %vm389, %v385, 0
      %v394 = vsel %vm389, %v386, 0
      %v397 = vsel %vm389, %v387, 0
      %v400 = vsel %vm389, %v388, 0
      %vm402 = vcmask 1041408
      %v404 = vsel %vm402, %v311, 0
      %v407 = vsel %vm402, %v312, 0
      %409 = vmatpush.bf16.msra.mxu0 0
      %410 = vmatpush.bf16.msra.mxu0 0
      %411 = vmatpush.bf16.msra.mxu0 0
      %412 = vmatpush.bf16.msra.mxu0 0
      %413 = vmatpush.bf16.msra.mxu0 0
      %414 = vmatpush.bf16.msra.mxu0 0
      %415 = vmatpush.bf16.msra.mxu0 0
      %416 = vmatpush.bf16.msra.mxu0 %v404
      %417 = vmatmul.bf16.gmra.mxu0 %v391
      %v418 = vpop.f32.mrf.mxu0
      %v419 = vadd.f32 %v332, %v418
      %v420 = vpop.f32.mrf.mxu0
      %v421 = vadd.f32 %v337, %v420
      %422 = vmatmul.bf16.gmra.mxu0 %v394
      %v423 = vpop.f32.mrf.mxu0
      %v424 = vadd.f32 %v342, %v423
      %v425 = vpop.f32.mrf.mxu0
      %v426 = vadd.f32 %v347, %v425
      %427 = vmatmul.bf16.gmra.mxu0 %v397
      %v428 = vpop.f32.mrf.mxu0
      %v429 = vadd.f32 %v352, %v428
      %v430 = vpop.f32.mrf.mxu0
      %v431 = vadd.f32 %v357, %v430
      %432 = vmatmul.bf16.gmra.mxu0 %v400
      %v433 = vpop.f32.mrf.mxu0
      %v434 = vadd.f32 %v362, %v433
      %v435 = vpop.f32.mrf.mxu0
      %v436 = vadd.f32 %v367, %v435
      %437 = vdwg.mxu0
      %438 = vmatpush.bf16.msra.mxu0 0
      %439 = vmatpush.bf16.msra.mxu0 0
      %440 = vmatpush.bf16.msra.mxu0 0
      %441 = vmatpush.bf16.msra.mxu0 0
      %442 = vmatpush.bf16.msra.mxu0 0
      %443 = vmatpush.bf16.msra.mxu0 0
      %444 = vmatpush.bf16.msra.mxu0 0
      %445 = vmatpush.bf16.msra.mxu0 %v407
      %446 = vmatmul.bf16.gmra.mxu0 %v391
      %v447 = vpop.f32.mrf.mxu0
      %v448 = vadd.f32 %v332, %v447
      %v449 = vpop.f32.mrf.mxu0
      %v450 = vadd.f32 %v337, %v449
      %451 = vmatmul.bf16.gmra.mxu0 %v394
      %v452 = vpop.f32.mrf.mxu0
      %v453 = vadd.f32 %v342, %v452
      %v454 = vpop.f32.mrf.mxu0
      %v455 = vadd.f32 %v347, %v454
      %456 = vmatmul.bf16.gmra.mxu0 %v397
      %v457 = vpop.f32.mrf.mxu0
      %v458 = vadd.f32 %v352, %v457
      %v459 = vpop.f32.mrf.mxu0
      %v460 = vadd.f32 %v357, %v459
      %461 = vmatmul.bf16.gmra.mxu0 %v400
      %v462 = vpop.f32.mrf.mxu0
      %v463 = vadd.f32 %v362, %v462
      %v464 = vpop.f32.mrf.mxu0
      %v465 = vadd.f32 %v367, %v464
      %466 = vdwg.mxu0
      %vm467 = vcmp.ge.f32.partialorder %v419, 0.0
      %vm468 = vcmp.ge.f32.partialorder %v448, 0.0
      %vm469 = vcmp.ge.f32.partialorder %v421, 0.0
      %vm470 = vcmp.ge.f32.partialorder %v450, 0.0
      %vm471 = vcmp.ge.f32.partialorder %v424, 0.0
      %vm472 = vcmp.ge.f32.partialorder %v453, 0.0
      %vm473 = vcmp.ge.f32.partialorder %v426, 0.0
      %vm474 = vcmp.ge.f32.partialorder %v455, 0.0
      %vm475 = vcmp.ge.f32.partialorder %v429, 0.0
      %vm476 = vcmp.ge.f32.partialorder %v458, 0.0
      %vm477 = vcmp.ge.f32.partialorder %v431, 0.0
      %vm478 = vcmp.ge.f32.partialorder %v460, 0.0
      %vm479 = vcmp.ge.f32.partialorder %v434, 0.0
      %vm480 = vcmp.ge.f32.partialorder %v463, 0.0
      %vm481 = vcmp.ge.f32.partialorder %v436, 0.0
      %vm482 = vcmp.ge.f32.partialorder %v465, 0.0
      %v483 = vmul.f32 %v419, 0.2
      %v484 = vmul.f32 %v448, 0.2
      %v485 = vmul.f32 %v421, 0.2
      %v486 = vmul.f32 %v450, 0.2
      %v487 = vmul.f32 %v424, 0.2
      %v488 = vmul.f32 %v453, 0.2
      %v489 = vmul.f32 %v426, 0.2
      %v490 = vmul.f32 %v455, 0.2
      %v491 = vmul.f32 %v429, 0.2
      %v492 = vmul.f32 %v458, 0.2
      %v493 = vmul.f32 %v431, 0.2
      %v494 = vmul.f32 %v460, 0.2
      %v495 = vmul.f32 %v434, 0.2
      %v496 = vmul.f32 %v463, 0.2
      %v497 = vmul.f32 %v436, 0.2
      %v498 = vmul.f32 %v465, 0.2
      %v499 = vsel %vm467, %v419, %v483
      %v500 = vsel %vm468, %v448, %v484
      %v501 = vsel %vm469, %v421, %v485
      %v502 = vsel %vm470, %v450, %v486
      %v503 = vsel %vm471, %v424, %v487
      %v504 = vsel %vm472, %v453, %v488
      %v505 = vsel %vm473, %v426, %v489
      %v506 = vsel %vm474, %v455, %v490
      %v507 = vsel %vm475, %v429, %v491
      %v508 = vsel %vm476, %v458, %v492
      %v509 = vsel %vm477, %v431, %v493
      %v510 = vsel %vm478, %v460, %v494
      %v511 = vsel %vm479, %v434, %v495
      %v512 = vsel %vm480, %v463, %v496
      %v513 = vsel %vm481, %v436, %v497
      %v514 = vsel %vm482, %v465, %v498
      %v515 = vld [vmem:[%s3] sm:$0xf]
      %v516 = vld [vmem:[%s3 + $0x4] sm:$0xf]
      %v517 = vld [vmem:[%s3 + $0x8] sm:$0xf]
      %v518 = vld [vmem:[%s3 + $0xc] sm:$0xf]
      %v519 = vld [vmem:[%s3 + $0x10] sm:$0xf]
      %v520 = vld [vmem:[%s3 + $0x14] sm:$0xf]
      %v521 = vld [vmem:[%s3 + $0x18] sm:$0xf]
      %v522 = vld [vmem:[%s3 + $0x1c] sm:$0xf]
      %v523 = vld [vmem:[%s3 + $0x20] sm:$0xf]
      %v524 = vld [vmem:[%s3 + $0x24] sm:$0xf]
      %v525 = vld [vmem:[%s3 + $0x28] sm:$0xf]
      %v526 = vld [vmem:[%s3 + $0x2c] sm:$0xf]
      %v527 = vld [vmem:[%s3 + $0x30] sm:$0xf]
      %v528 = vld [vmem:[%s3 + $0x34] sm:$0xf]
      %v529 = vld [vmem:[%s3 + $0x38] sm:$0xf]
      %v530 = vld [vmem:[%s3 + $0x3c] sm:$0xf]
      %v531 = vpack.c.bf16 %v501, %v499
      %v532 = vpack.c.bf16 %v502, %v500
      %v533 = vpack.c.bf16 %v505, %v503
      %v534 = vpack.c.bf16 %v506, %v504
      %v535 = vpack.c.bf16 %v509, %v507
      %v536 = vpack.c.bf16 %v510, %v508
      %v537 = vpack.c.bf16 %v513, %v511
      %v538 = vpack.c.bf16 %v514, %v512
      %v555 = vunpack.c.l.b16 %v515
      %v556 = vunpack.c.l.b16 %v516
      %v557 = vunpack.c.l.b16 %v517
      %v558 = vunpack.c.l.b16 %v518
      %v559 = vunpack.c.l.b16 %v519
      %v560 = vunpack.c.l.b16 %v520
      %v561 = vunpack.c.l.b16 %v521
      %v562 = vunpack.c.l.b16 %v522
      %v563 = vunpack.c.l.b16 %v523
      %v564 = vunpack.c.l.b16 %v524
      %v565 = vunpack.c.l.b16 %v525
      %v566 = vunpack.c.l.b16 %v526
      %v567 = vunpack.c.l.b16 %v527
      %v568 = vunpack.c.l.b16 %v528
      %v569 = vunpack.c.l.b16 %v529
      %v570 = vunpack.c.l.b16 %v530
      %v571 = vpack.c.b16 %v556, %v555
      %v572 = vpack.c.b16 %v558, %v557
      %v573 = vpack.c.b16 %v560, %v559
      %v574 = vpack.c.b16 %v562, %v561
      %v575 = vpack.c.b16 %v564, %v563
      %v576 = vpack.c.b16 %v566, %v565
      %v577 = vpack.c.b16 %v568, %v567
      %v578 = vpack.c.b16 %v570, %v569
      %vm579 = vcmask 523264
      %v581 = vsel %vm579, %v571, 0
      %v584 = vsel %vm579, %v572, 0
      %v587 = vsel %vm579, %v573, 0
      %v590 = vsel %vm579, %v574, 0
      %v593 = vsel %vm579, %v575, 0
      %v596 = vsel %vm579, %v576, 0
      %v599 = vsel %vm579, %v577, 0
      %v602 = vsel %vm579, %v578, 0
      %604 = vmatpush.bf16.msra.mxu0 0
      %605 = vmatpush.bf16.msra.mxu0 0
      %606 = vmatpush.bf16.msra.mxu0 0
      %607 = vmatpush.bf16.msra.mxu0 0
      %608 = vmatpush.bf16.msra.mxu0 %v537
      %609 = vmatpush.bf16.msra.mxu0 %v535
      %610 = vmatpush.bf16.msra.mxu0 %v533
      %611 = vmatpush.bf16.msra.mxu0 %v531
      %612 = vmatmul.bf16.gmra.mxu0 %v581
      %v613 = vpop.f32.mrf.mxu0
      %v614 = vadd.f32 0.0, %v613
      %v615 = vpop.f32.mrf.mxu0
      %v616 = vadd.f32 0.0, %v615
      %617 = vmatmul.bf16.gmra.mxu0 %v584
      %v618 = vpop.f32.mrf.mxu0
      %v619 = vadd.f32 0.0, %v618
      %v620 = vpop.f32.mrf.mxu0
      %v621 = vadd.f32 0.0, %v620
      %622 = vmatmul.bf16.gmra.mxu0 %v587
      %v623 = vpop.f32.mrf.mxu0
      %v624 = vadd.f32 0.0, %v623
      %v625 = vpop.f32.mrf.mxu0
      %v626 = vadd.f32 0.0, %v625
      %627 = vmatmul.bf16.gmra.mxu0 %v590
      %v628 = vpop.f32.mrf.mxu0
      %v629 = vadd.f32 0.0, %v628
      %v630 = vpop.f32.mrf.mxu0
      %v631 = vadd.f32 0.0, %v630
      %632 = vmatmul.bf16.gmra.mxu0 %v593
      %v633 = vpop.f32.mrf.mxu0
      %v634 = vadd.f32 0.0, %v633
      %v635 = vpop.f32.mrf.mxu0
      %v636 = vadd.f32 0.0, %v635
      %637 = vmatmul.bf16.gmra.mxu0 %v596
      %v638 = vpop.f32.mrf.mxu0
      %v639 = vadd.f32 0.0, %v638
      %v640 = vpop.f32.mrf.mxu0
      %v641 = vadd.f32 0.0, %v640
      %642 = vmatmul.bf16.gmra.mxu0 %v599
      %v643 = vpop.f32.mrf.mxu0
      %v644 = vadd.f32 0.0, %v643
      %v645 = vpop.f32.mrf.mxu0
      %v646 = vadd.f32 0.0, %v645
      %647 = vmatmul.bf16.gmra.mxu0 %v602
      %v648 = vpop.f32.mrf.mxu0
      %v649 = vadd.f32 0.0, %v648
      %v650 = vpop.f32.mrf.mxu0
      %v651 = vadd.f32 0.0, %v650
      %652 = vdwg.mxu0
      %653 = vmatpush.bf16.msra.mxu0 0
      %654 = vmatpush.bf16.msra.mxu0 0
      %655 = vmatpush.bf16.msra.mxu0 0
      %656 = vmatpush.bf16.msra.mxu0 0
      %657 = vmatpush.bf16.msra.mxu0 %v538
      %658 = vmatpush.bf16.msra.mxu0 %v536
      %659 = vmatpush.bf16.msra.mxu0 %v534
      %660 = vmatpush.bf16.msra.mxu0 %v532
      %661 = vmatmul.bf16.gmra.mxu0 %v581
      %v662 = vpop.f32.mrf.mxu0
      %v663 = vadd.f32 0.0, %v662
      %v664 = vpop.f32.mrf.mxu0
      %v665 = vadd.f32 0.0, %v664
      %666 = vmatmul.bf16.gmra.mxu0 %v584
      %v667 = vpop.f32.mrf.mxu0
      %v668 = vadd.f32 0.0, %v667
      %v669 = vpop.f32.mrf.mxu0
      %v670 = vadd.f32 0.0, %v669
      %671 = vmatmul.bf16.gmra.mxu0 %v587
      %v672 = vpop.f32.mrf.mxu0
      %v673 = vadd.f32 0.0, %v672
      %v674 = vpop.f32.mrf.mxu0
      %v675 = vadd.f32 0.0, %v674
      %676 = vmatmul.bf16.gmra.mxu0 %v590
      %v677 = vpop.f32.mrf.mxu0
      %v678 = vadd.f32 0.0, %v677
      %v679 = vpop.f32.mrf.mxu0
      %v680 = vadd.f32 0.0, %v679
      %681 = vmatmul.bf16.gmra.mxu0 %v593
      %v682 = vpop.f32.mrf.mxu0
      %v683 = vadd.f32 0.0, %v682
      %v684 = vpop.f32.mrf.mxu0
      %v685 = vadd.f32 0.0, %v684
      %686 = vmatmul.bf16.gmra.mxu0 %v596
      %v687 = vpop.f32.mrf.mxu0
      %v688 = vadd.f32 0.0, %v687
      %v689 = vpop.f32.mrf.mxu0
      %v690 = vadd.f32 0.0, %v689
      %691 = vmatmul.bf16.gmra.mxu0 %v599
      %v692 = vpop.f32.mrf.mxu0
      %v693 = vadd.f32 0.0, %v692
      %v694 = vpop.f32.mrf.mxu0
      %v695 = vadd.f32 0.0, %v694
      %696 = vmatmul.bf16.gmra.mxu0 %v602
      %v697 = vpop.f32.mrf.mxu0
      %v698 = vadd.f32 0.0, %v697
      %v699 = vpop.f32.mrf.mxu0
      %v700 = vadd.f32 0.0, %v699
      %701 = vdwg.mxu0
      %v702 = vld [vmem:[#allocation2] sm:$0xff]
      %v703 = vld [vmem:[#allocation2 + $0x8] sm:$0xff]
      %v704 = vld [vmem:[#allocation2 + $0x10] sm:$0xff]
      %v705 = vld [vmem:[#allocation2 + $0x18] sm:$0xff]
      %v706 = vld [vmem:[#allocation2 + $0x20] sm:$0xff]
      %v707 = vld [vmem:[#allocation2 + $0x28] sm:$0xff]
      %v708 = vld [vmem:[#allocation2 + $0x30] sm:$0xff]
      %v709 = vld [vmem:[#allocation2 + $0x38] sm:$0xff]
      %v710 = vld [vmem:[#allocation2 + $0x40] sm:$0xff]
      %v711 = vld [vmem:[#allocation2 + $0x48] sm:$0xff]
      %v712 = vld [vmem:[#allocation2 + $0x50] sm:$0xff]
      %v713 = vld [vmem:[#allocation2 + $0x58] sm:$0xff]
      %v714 = vld [vmem:[#allocation2 + $0x60] sm:$0xff]
      %v715 = vld [vmem:[#allocation2 + $0x68] sm:$0xff]
      %v716 = vld [vmem:[#allocation2 + $0x70] sm:$0xff]
      %v717 = vld [vmem:[#allocation2 + $0x78] sm:$0xff]
      %v718 = vadd.f32 %v614, %v663
      %719 = vadd.xlane.f32.xlu0 %v718
      %v720 = vpop.xlane.xlu0 %719
      %v721 = vadd.f32 %v616, %v665
      %722 = vadd.xlane.f32.xlu0 %v721
      %v723 = vpop.xlane.xlu0 %722
      %v724 = vadd.f32 %v619, %v668
      %725 = vadd.xlane.f32.xlu0 %v724
      %v726 = vpop.xlane.xlu0 %725
      %v727 = vadd.f32 %v621, %v670
      %728 = vadd.xlane.f32.xlu0 %v727
      %v729 = vpop.xlane.xlu0 %728
      %v730 = vadd.f32 %v624, %v673
      %731 = vadd.xlane.f32.xlu0 %v730
      %v732 = vpop.xlane.xlu0 %731
      %v733 = vadd.f32 %v626, %v675
      %734 = vadd.xlane.f32.xlu0 %v733
      %v735 = vpop.xlane.xlu0 %734
      %v736 = vadd.f32 %v629, %v678
      %737 = vadd.xlane.f32.xlu0 %v736
      %v738 = vpop.xlane.xlu0 %737
      %v739 = vadd.f32 %v631, %v680
      %740 = vadd.xlane.f32.xlu0 %v739
      %v741 = vpop.xlane.xlu0 %740
      %v742 = vadd.f32 %v634, %v683
      %743 = vadd.xlane.f32.xlu0 %v742
      %v744 = vpop.xlane.xlu0 %743
      %v745 = vadd.f32 %v636, %v685
      %746 = vadd.xlane.f32.xlu0 %v745
      %v747 = vpop.xlane.xlu0 %746
      %v748 = vadd.f32 %v639, %v688
      %749 = vadd.xlane.f32.xlu0 %v748
      %v750 = vpop.xlane.xlu0 %749
      %v751 = vadd.f32 %v641, %v690
      %752 = vadd.xlane.f32.xlu0 %v751
      %v753 = vpop.xlane.xlu0 %752
      %v754 = vadd.f32 %v644, %v693
      %755 = vadd.xlane.f32.xlu0 %v754
      %v756 = vpop.xlane.xlu0 %755
      %v757 = vadd.f32 %v646, %v695
      %758 = vadd.xlane.f32.xlu0 %v757
      %v759 = vpop.xlane.xlu0 %758
      %v760 = vadd.f32 %v649, %v698
      %761 = vadd.xlane.f32.xlu0 %v760
      %v762 = vpop.xlane.xlu0 %761
      %v763 = vadd.f32 %v651, %v700
      %764 = vadd.xlane.f32.xlu0 %v763
      %v765 = vpop.xlane.xlu0 %764
      %v766 = vadd.f32 %v702, %v720
      %v767 = vadd.f32 %v703, %v723
      %v768 = vadd.f32 %v704, %v726
      %v769 = vadd.f32 %v705, %v729
      %v770 = vadd.f32 %v706, %v732
      %v771 = vadd.f32 %v707, %v735
      %v772 = vadd.f32 %v708, %v738
      %v773 = vadd.f32 %v709, %v741
      %v774 = vadd.f32 %v710, %v744
      %v775 = vadd.f32 %v711, %v747
      %v776 = vadd.f32 %v712, %v750
      %v777 = vadd.f32 %v713, %v753
      %v778 = vadd.f32 %v714, %v756
      %v779 = vadd.f32 %v715, %v759
      %v780 = vadd.f32 %v716, %v762
      %v781 = vadd.f32 %v717, %v765
      %vm782 = vcmask 7168
      %783 = vst.msk [vmem:[#allocation2] sm:$0xff] %vm782, %v766
      %784 = vst.msk [vmem:[#allocation2 + $0x8] sm:$0xff] %vm782, %v767
      %785 = vst.msk [vmem:[#allocation2 + $0x10] sm:$0xff] %vm782, %v768
      %786 = vst.msk [vmem:[#allocation2 + $0x18] sm:$0xff] %vm782, %v769
      %787 = vst.msk [vmem:[#allocation2 + $0x20] sm:$0xff] %vm782, %v770
      %788 = vst.msk [vmem:[#allocation2 + $0x28] sm:$0xff] %vm782, %v771
      %789 = vst.msk [vmem:[#allocation2 + $0x30] sm:$0xff] %vm782, %v772
      %790 = vst.msk [vmem:[#allocation2 + $0x38] sm:$0xff] %vm782, %v773
      %791 = vst.msk [vmem:[#allocation2 + $0x40] sm:$0xff] %vm782, %v774
      %792 = vst.msk [vmem:[#allocation2 + $0x48] sm:$0xff] %vm782, %v775
      %793 = vst.msk [vmem:[#allocation2 + $0x50] sm:$0xff] %vm782, %v776
      %794 = vst.msk [vmem:[#allocation2 + $0x58] sm:$0xff] %vm782, %v777
      %795 = vst.msk [vmem:[#allocation2 + $0x60] sm:$0xff] %vm782, %v778
      %796 = vst.msk [vmem:[#allocation2 + $0x68] sm:$0xff] %vm782, %v779
      %797 = vst.msk [vmem:[#allocation2 + $0x70] sm:$0xff] %vm782, %v780
      %798 = vst.msk [vmem:[#allocation2 + $0x78] sm:$0xff] %vm782, %v781
      %v799 = vld [vmem:[#allocation3] sm:$0xff]
      %v800 = vld [vmem:[#allocation3 + $0x8] sm:$0xff]
      %v801 = vld [vmem:[#allocation3 + $0x10] sm:$0xff]
      %v802 = vld [vmem:[#allocation3 + $0x18] sm:$0xff]
      %v803 = vld [vmem:[#allocation3 + $0x20] sm:$0xff]
      %v804 = vld [vmem:[#allocation3 + $0x28] sm:$0xff]
      %v805 = vld [vmem:[#allocation3 + $0x30] sm:$0xff]
      %v806 = vld [vmem:[#allocation3 + $0x38] sm:$0xff]
      %v807 = vld [vmem:[#allocation3 + $0x40] sm:$0xff]
      %v808 = vld [vmem:[#allocation3 + $0x48] sm:$0xff]
      %v809 = vld [vmem:[#allocation3 + $0x50] sm:$0xff]
      %v810 = vld [vmem:[#allocation3 + $0x58] sm:$0xff]
      %v811 = vld [vmem:[#allocation3 + $0x60] sm:$0xff]
      %v812 = vld [vmem:[#allocation3 + $0x68] sm:$0xff]
      %v813 = vld [vmem:[#allocation3 + $0x70] sm:$0xff]
      %v814 = vld [vmem:[#allocation3 + $0x78] sm:$0xff]
      %v815 = vmul.f32 %v614, %v614
      %v816 = vmul.f32 %v663, %v663
      %v817 = vmul.f32 %v616, %v616
      %v818 = vmul.f32 %v665, %v665
      %v819 = vmul.f32 %v619, %v619
      %v820 = vmul.f32 %v668, %v668
      %v821 = vmul.f32 %v621, %v621
      %v822 = vmul.f32 %v670, %v670
      %v823 = vmul.f32 %v624, %v624
      %v824 = vmul.f32 %v673, %v673
      %v825 = vmul.f32 %v626, %v626
      %v826 = vmul.f32 %v675, %v675
      %v827 = vmul.f32 %v629, %v629
      %v828 = vmul.f32 %v678, %v678
      %v829 = vmul.f32 %v631, %v631
      %v830 = vmul.f32 %v680, %v680
      %v831 = vmul.f32 %v634, %v634
      %v832 = vmul.f32 %v683, %v683
      %v833 = vmul.f32 %v636, %v636
      %v834 = vmul.f32 %v685, %v685
      %v835 = vmul.f32 %v639, %v639
      %v836 = vmul.f32 %v688, %v688
      %v837 = vmul.f32 %v641, %v641
      %v838 = vmul.f32 %v690, %v690
      %v839 = vmul.f32 %v644, %v644
      %v840 = vmul.f32 %v693, %v693
      %v841 = vmul.f32 %v646, %v646
      %v842 = vmul.f32 %v695, %v695
      %v843 = vmul.f32 %v649, %v649
      %v844 = vmul.f32 %v698, %v698
      %v845 = vmul.f32 %v651, %v651
      %v846 = vmul.f32 %v700, %v700
      %v847 = vadd.f32 %v815, %v816
      %848 = vadd.xlane.f32.xlu0 %v847
      %v849 = vpop.xlane.xlu0 %848
      %v850 = vadd.f32 %v817, %v818
      %851 = vadd.xlane.f32.xlu0 %v850
      %v852 = vpop.xlane.xlu0 %851
      %v853 = vadd.f32 %v819, %v820
      %854 = vadd.xlane.f32.xlu0 %v853
      %v855 = vpop.xlane.xlu0 %854
      %v856 = vadd.f32 %v821, %v822
      %857 = vadd.xlane.f32.xlu0 %v856
      %v858 = vpop.xlane.xlu0 %857
      %v859 = vadd.f32 %v823, %v824
      %860 = vadd.xlane.f32.xlu0 %v859
      %v861 = vpop.xlane.xlu0 %860
      %v862 = vadd.f32 %v825, %v826
      %863 = vadd.xlane.f32.xlu0 %v862
      %v864 = vpop.xlane.xlu0 %863
      %v865 = vadd.f32 %v827, %v828
      %866 = vadd.xlane.f32.xlu0 %v865
      %v867 = vpop.xlane.xlu0 %866
      %v868 = vadd.f32 %v829, %v830
      %869 = vadd.xlane.f32.xlu0 %v868
      %v870 = vpop.xlane.xlu0 %869
      %v871 = vadd.f32 %v831, %v832
      %872 = vadd.xlane.f32.xlu0 %v871
      %v873 = vpop.xlane.xlu0 %872
      %v874 = vadd.f32 %v833, %v834
      %875 = vadd.xlane.f32.xlu0 %v874
      %v876 = vpop.xlane.xlu0 %875
      %v877 = vadd.f32 %v835, %v836
      %878 = vadd.xlane.f32.xlu0 %v877
      %v879 = vpop.xlane.xlu0 %878
      %v880 = vadd.f32 %v837, %v838
      %881 = vadd.xlane.f32.xlu0 %v880
      %v882 = vpop.xlane.xlu0 %881
      %v883 = vadd.f32 %v839, %v840
      %884 = vadd.xlane.f32.xlu0 %v883
      %v885 = vpop.xlane.xlu0 %884
      %v886 = vadd.f32 %v841, %v842
      %887 = vadd.xlane.f32.xlu0 %v886
      %v888 = vpop.xlane.xlu0 %887
      %v889 = vadd.f32 %v843, %v844
      %890 = vadd.xlane.f32.xlu0 %v889
      %v891 = vpop.xlane.xlu0 %890
      %v892 = vadd.f32 %v845, %v846
      %893 = vadd.xlane.f32.xlu0 %v892
      %v894 = vpop.xlane.xlu0 %893
      %v895 = vadd.f32 %v799, %v849
      %v896 = vadd.f32 %v800, %v852
      %v897 = vadd.f32 %v801, %v855
      %v898 = vadd.f32 %v802, %v858
      %v899 = vadd.f32 %v803, %v861
      %v900 = vadd.f32 %v804, %v864
      %v901 = vadd.f32 %v805, %v867
      %v902 = vadd.f32 %v806, %v870
      %v903 = vadd.f32 %v807, %v873
      %v904 = vadd.f32 %v808, %v876
      %v905 = vadd.f32 %v809, %v879
      %v906 = vadd.f32 %v810, %v882
      %v907 = vadd.f32 %v811, %v885
      %v908 = vadd.f32 %v812, %v888
      %v909 = vadd.f32 %v813, %v891
      %v910 = vadd.f32 %v814, %v894
      %911 = vst.msk [vmem:[#allocation3] sm:$0xff] %vm782, %v895
      %912 = vst.msk [vmem:[#allocation3 + $0x8] sm:$0xff] %vm782, %v896
      %913 = vst.msk [vmem:[#allocation3 + $0x10] sm:$0xff] %vm782, %v897
      %914 = vst.msk [vmem:[#allocation3 + $0x18] sm:$0xff] %vm782, %v898
      %915 = vst.msk [vmem:[#allocation3 + $0x20] sm:$0xff] %vm782, %v899
      %916 = vst.msk [vmem:[#allocation3 + $0x28] sm:$0xff] %vm782, %v900
      %917 = vst.msk [vmem:[#allocation3 + $0x30] sm:$0xff] %vm782, %v901
      %918 = vst.msk [vmem:[#allocation3 + $0x38] sm:$0xff] %vm782, %v902
      %919 = vst.msk [vmem:[#allocation3 + $0x40] sm:$0xff] %vm782, %v903
      %920 = vst.msk [vmem:[#allocation3 + $0x48] sm:$0xff] %vm782, %v904
      %921 = vst.msk [vmem:[#allocation3 + $0x50] sm:$0xff] %vm782, %v905
      %922 = vst.msk [vmem:[#allocation3 + $0x58] sm:$0xff] %vm782, %v906
      %923 = vst.msk [vmem:[#allocation3 + $0x60] sm:$0xff] %vm782, %v907
      %924 = vst.msk [vmem:[#allocation3 + $0x68] sm:$0xff] %vm782, %v908
      %925 = vst.msk [vmem:[#allocation3 + $0x70] sm:$0xff] %vm782, %v909
      %926 = vst.msk [vmem:[#allocation3 + $0x78] sm:$0xff] %vm782, %v910
      // Predicated region
      $region41: #{tpu_custom_call.1} parent=35 // pred_check
        %p927 = pneg %p267
      $region42: #{tpu_custom_call.1} parent=35 // pred_check_branch
        %929 = sbr.rel (%p927) target = $region44
      $region43: #{tpu_custom_call.1} parent=35 // pred_region
        %v930 = vld [vmem:[#allocation2] sm:$0xff]
        %v931 = vld [vmem:[#allocation2 + $0x8] sm:$0xff]
        %v932 = vld [vmem:[#allocation2 + $0x10] sm:$0xff]
        %v933 = vld [vmem:[#allocation2 + $0x18] sm:$0xff]
        %v934 = vld [vmem:[#allocation2 + $0x20] sm:$0xff]
        %v935 = vld [vmem:[#allocation2 + $0x28] sm:$0xff]
        %v936 = vld [vmem:[#allocation2 + $0x30] sm:$0xff]
        %v937 = vld [vmem:[#allocation2 + $0x38] sm:$0xff]
        %v938 = vld [vmem:[#allocation2 + $0x40] sm:$0xff]
        %v939 = vld [vmem:[#allocation2 + $0x48] sm:$0xff]
        %v940 = vld [vmem:[#allocation2 + $0x50] sm:$0xff]
        %v941 = vld [vmem:[#allocation2 + $0x58] sm:$0xff]
        %v942 = vld [vmem:[#allocation2 + $0x60] sm:$0xff]
        %v943 = vld [vmem:[#allocation2 + $0x68] sm:$0xff]
        %v944 = vld [vmem:[#allocation2 + $0x70] sm:$0xff]
        %v945 = vld [vmem:[#allocation2 + $0x78] sm:$0xff]
        %946 = vst.msk [vmem:[%s260] sm:$0xff] %vm782, %v930
        %947 = vst.msk [vmem:[%s260 + $0x8] sm:$0xff] %vm782, %v931
        %948 = vst.msk [vmem:[%s260 + $0x10] sm:$0xff] %vm782, %v932
        %949 = vst.msk [vmem:[%s260 + $0x18] sm:$0xff] %vm782, %v933
        %950 = vst.msk [vmem:[%s260 + $0x20] sm:$0xff] %vm782, %v934
        %951 = vst.msk [vmem:[%s260 + $0x28] sm:$0xff] %vm782, %v935
        %952 = vst.msk [vmem:[%s260 + $0x30] sm:$0xff] %vm782, %v936
        %953 = vst.msk [vmem:[%s260 + $0x38] sm:$0xff] %vm782, %v937
        %954 = vst.msk [vmem:[%s260 + $0x40] sm:$0xff] %vm782, %v938
        %955 = vst.msk [vmem:[%s260 + $0x48] sm:$0xff] %vm782, %v939
        %956 = vst.msk [vmem:[%s260 + $0x50] sm:$0xff] %vm782, %v940
        %957 = vst.msk [vmem:[%s260 + $0x58] sm:$0xff] %vm782, %v941
        %958 = vst.msk [vmem:[%s260 + $0x60] sm:$0xff] %vm782, %v942
        %959 = vst.msk [vmem:[%s260 + $0x68] sm:$0xff] %vm782, %v943
        %960 = vst.msk [vmem:[%s260 + $0x70] sm:$0xff] %vm782, %v944
        %961 = vst.msk [vmem:[%s260 + $0x78] sm:$0xff] %vm782, %v945
        %v962 = vld [vmem:[#allocation3] sm:$0xff]
        %v963 = vld [vmem:[#allocation3 + $0x8] sm:$0xff]
        %v964 = vld [vmem:[#allocation3 + $0x10] sm:$0xff]
        %v965 = vld [vmem:[#allocation3 + $0x18] sm:$0xff]
        %v966 = vld [vmem:[#allocation3 + $0x20] sm:$0xff]
        %v967 = vld [vmem:[#allocation3 + $0x28] sm:$0xff]
        %v968 = vld [vmem:[#allocation3 + $0x30] sm:$0xff]
        %v969 = vld [vmem:[#allocation3 + $0x38] sm:$0xff]
        %v970 = vld [vmem:[#allocation3 + $0x40] sm:$0xff]
        %v971 = vld [vmem:[#allocation3 + $0x48] sm:$0xff]
        %v972 = vld [vmem:[#allocation3 + $0x50] sm:$0xff]
        %v973 = vld [vmem:[#allocation3 + $0x58] sm:$0xff]
        %v974 = vld [vmem:[#allocation3 + $0x60] sm:$0xff]
        %v975 = vld [vmem:[#allocation3 + $0x68] sm:$0xff]
        %v976 = vld [vmem:[#allocation3 + $0x70] sm:$0xff]
        %v977 = vld [vmem:[#allocation3 + $0x78] sm:$0xff]
        %978 = vst.msk [vmem:[%s265] sm:$0xff] %vm782, %v962
        %979 = vst.msk [vmem:[%s265 + $0x8] sm:$0xff] %vm782, %v963
        %980 = vst.msk [vmem:[%s265 + $0x10] sm:$0xff] %vm782, %v964
        %981 = vst.msk [vmem:[%s265 + $0x18] sm:$0xff] %vm782, %v965
        %982 = vst.msk [vmem:[%s265 + $0x20] sm:$0xff] %vm782, %v966
        %983 = vst.msk [vmem:[%s265 + $0x28] sm:$0xff] %vm782, %v967
        %984 = vst.msk [vmem:[%s265 + $0x30] sm:$0xff] %vm782, %v968
        %985 = vst.msk [vmem:[%s265 + $0x38] sm:$0xff] %vm782, %v969
        %986 = vst.msk [vmem:[%s265 + $0x40] sm:$0xff] %vm782, %v970
        %987 = vst.msk [vmem:[%s265 + $0x48] sm:$0xff] %vm782, %v971
        %988 = vst.msk [vmem:[%s265 + $0x50] sm:$0xff] %vm782, %v972
        %989 = vst.msk [vmem:[%s265 + $0x58] sm:$0xff] %vm782, %v973
        %990 = vst.msk [vmem:[%s265 + $0x60] sm:$0xff] %vm782, %v974
        %991 = vst.msk [vmem:[%s265 + $0x68] sm:$0xff] %vm782, %v975
        %992 = vst.msk [vmem:[%s265 + $0x70] sm:$0xff] %vm782, %v976
        %993 = vst.msk [vmem:[%s265 + $0x78] sm:$0xff] %vm782, %v977
      $region44: #{tpu_custom_call.1} parent=35 // pred_fallthru
        _
      %p994 = scmp.lt.s32.totalorder %s21, 1
      %s995 = scalar_select %p994, %s21, 1
      %s996 = smul.addr %s995, 16
      %s997 = smul.addr %s996, 8
      %s998 = scalar_lea.vmem %s4, %s997
      %p999 = scmp.lt.s32.totalorder %s21, 1
      %s1000 = scalar_select %p999, %s21, 1
      %s1001 = smul.addr %s1000, 16
      %s1002 = smul.addr %s1001, 8
      %s1003 = scalar_lea.vmem %s5, %s1002
      // Predicated region
      $region45: #{tpu_custom_call.1} parent=35 // pred_check
        %p1004 = pneg %p138
      $region46: #{tpu_custom_call.1} parent=35 // pred_check_branch
        %1006 = sbr.rel (%p1004) target = $region48
      $region47: #{tpu_custom_call.1} parent=35 // pred_region
        _
      $region48: #{tpu_custom_call.1} parent=35 // pred_fallthru
        _
      // Predicated region
      $region49: #{tpu_custom_call.1} parent=35 // pred_check
        %p1007 = pneg %p164
      $region50: #{tpu_custom_call.1} parent=35 // pred_check_branch
        %1009 = sbr.rel (%p1007) target = $region52
      $region51: #{tpu_custom_call.1} parent=35 // pred_region
        _
      $region52: #{tpu_custom_call.1} parent=35 // pred_fallthru
        _
    $region36: #{tpu_custom_call.1} parent=5 // pred_fallthru
      _
    %p1010 = scmp.le.s32.totalorder 2, %s12
    // Predicated region
    $region53: #{tpu_custom_call.1} parent=5 // pred_check
      %p1011 = pneg %p1010
    $region54: #{tpu_custom_call.1} parent=5 // pred_check_branch
      %1013 = sbr.rel (%p1011) target = $region56
    $region55: #{tpu_custom_call.1} parent=5 // pred_region
      %s1014 = ssub.s32 %s12, 2
      // Predicated region
      $region57: #{tpu_custom_call.1} parent=55 // pred_check
        %p1015 = pneg %p144
      $region58: #{tpu_custom_call.1} parent=55 // pred_check_branch
        %1017 = sbr.rel (%p1015) target = $region60
      $region59: #{tpu_custom_call.1} parent=55 // pred_region
        %p1018 = scmp.lt.s32.totalorder %s23, 1
        %s1019 = scalar_select %p1018, %s23, 1
        %s1020 = smul.addr %s1019, 16
        %s1021 = smul.addr %s1020, 8
        %s1022 = scalar_lea.vmem %s4, %s1021
      $region60: #{tpu_custom_call.1} parent=55 // pred_fallthru
        _
      // Predicated region
      $region61: #{tpu_custom_call.1} parent=55 // pred_check
        %p1023 = pneg %p170
      $region62: #{tpu_custom_call.1} parent=55 // pred_check_branch
        %1025 = sbr.rel (%p1023) target = $region64
      $region63: #{tpu_custom_call.1} parent=55 // pred_region
        %p1026 = scmp.lt.s32.totalorder %s23, 1
        %s1027 = scalar_select %p1026, %s23, 1
        %s1028 = smul.addr %s1027, 16
        %s1029 = smul.addr %s1028, 8
        %s1030 = scalar_lea.vmem %s5, %s1029
      $region64: #{tpu_custom_call.1} parent=55 // pred_fallthru
        _
    $region56: #{tpu_custom_call.1} parent=5 // pred_fallthru
      _
  $region6: #{tpu_custom_call.1} parent=0 // loop_footer
    %s16 = sadd.s32 1, %s12
  $region7: #{tpu_custom_call.1} parent=0 // loop_footer_branch
    %11 = sbr.rel target = $region3
  $region8: #{tpu_custom_call.1} parent=0 // loop_exit
    _

</llo_original>
